<compile_context>
chip_gen: v7x
topology: tpu7x:2x2x1
jax: 0.10.0
libtpu: 0.0.40
codegen_flags: <defaults>
</compile_context>

<pallas_src>
import functools

import jax
import jax.numpy as jnp
from jax.experimental import pallas as pl
from jax.experimental.pallas import tpu as pltpu


def _cdiv(a: int, b: int) -> int:
    return (a + b - 1) // b


def _round_up(x: int, m: int) -> int:
    return ((x + m - 1) // m) * m


# --------------------------------------------------------------------------
# Kernels
# --------------------------------------------------------------------------

def _single_block_kernel(x_ref, w_ref, b_ref, o_ref, *, other):
    """Whole problem in one VMEM block: y = relu(x @ w + b + other)."""
    y = jnp.dot(x_ref[...], w_ref[...], preferred_element_type=jnp.float32)
    y = y + b_ref[...] + other
    o_ref[...] = jnp.maximum(y, 0.0).astype(o_ref.dtype)


def _tiled_kernel(x_ref, w_ref, b_ref, o_ref, *, other):
    """One (tm, tn) output tile, accumulated in-place over the K grid axis."""
    k = pl.program_id(2)

    @pl.when(k == 0)
    def _():
        o_ref[...] = jnp.zeros_like(o_ref)

    # MXU matmul with f32 accumulation directly into the resident output block.
    o_ref[...] += jnp.dot(
        x_ref[...], w_ref[...], preferred_element_type=jnp.float32
    )

    @pl.when(k == pl.num_programs(2) - 1)
    def _():
        y = o_ref[...] + b_ref[...] + other          # f32 epilogue
        o_ref[...] = jnp.maximum(y, 0.0)


# --------------------------------------------------------------------------
# Tile selection helpers
# --------------------------------------------------------------------------

def _pick_tile(dim: int, align: int, cap: int) -> int:
    """Tile for a non-reduction axis: multiple of `align` (or the full dim),
    never larger than the array dim, capped at `cap` (cap is align-aligned)."""
    if dim < align:
        return dim                       # full-dim block (legal: equals array dim)
    if dim % align == 0:
        return min(cap, dim)
    return min(cap, (dim // align) * align)


def _pick_k(IN: int, cap: int):
    """Return (K_padded, tk) with tk exactly dividing K_padded.

    K must never contain garbage (it mixes into real outputs), so either use
    a single full-dim K block (no padding) or zero-pad to a 128 multiple and
    pick a 128-multiple divisor.
    """
    if IN <= cap:
        return IN, IN                    # one K block == full dim, no padding
    K128 = _round_up(IN, 128)
    q = K128 // 128
    d_cap = max(1, cap // 128)
    best = 1
    for d in range(1, min(q, d_cap) + 1):
        if q % d == 0:
            best = d
    return K128, 128 * best


# --------------------------------------------------------------------------
# Wrappers
# --------------------------------------------------------------------------

def _linear_add_relu_tiled(x, w, b2, other_f, tm_cap, tn_cap, tk_cap):
    B, IN = x.shape
    OUT = w.shape[1]

    tm = _pick_tile(B, 8, tm_cap)
    tn = _pick_tile(OUT, 128, tn_cap)
    K_pad, tk = _pick_k(IN, tk_cap)

    # Zero-pad ONLY the reduction axis, and only when genuinely required.
    if K_pad != IN:
        x = jnp.zeros((B, K_pad), x.dtype).at[:, :IN].set(x)
        w = jnp.zeros((K_pad, OUT), w.dtype).at[:IN, :].set(w)

    # Ensure the two 'parallel' grid axes expose >=2 blocks when possible so
    # both v7x TensorCores get work.
    grid_m, grid_n = _cdiv(B, tm), _cdiv(OUT, tn)
    if grid_m * grid_n < 2:
        if OUT > 128:
            tn = _round_up(_cdiv(OUT, 2), 128)
        elif B > 8:
            tm = _round_up(_cdiv(B, 2), 8)
        grid_m, grid_n = _cdiv(B, tm), _cdiv(OUT, tn)

    grid = (grid_m, grid_n, K_pad // tk)

    return pl.pallas_call(
        functools.partial(_tiled_kernel, other=other_f),
        out_shape=jax.ShapeDtypeStruct((B, OUT), jnp.float32),
        grid=grid,
        in_specs=[
            pl.BlockSpec((tm, tk), lambda i, j, k: (i, k)),   # x tile
            pl.BlockSpec((tk, tn), lambda i, j, k: (k, j)),   # w tile
            pl.BlockSpec((1, tn), lambda i, j, k: (0, j)),    # bias
        ],
        out_specs=pl.BlockSpec((tm, tn), lambda i, j, k: (i, j)),
        compiler_params=pltpu.CompilerParams(
            dimension_semantics=("parallel", "parallel", "arbitrary"),
            vmem_limit_bytes=48 * 1024 * 1024,
        ),
    )(x, w, b2)


def _linear_add_relu_2d(x, w, b2, other_f, *, tm, tn, tk, force_tiled):
    B, IN = x.shape
    OUT = w.shape[1]

    # Fast path: tiny problems run as a single full-array block (no grid, no
    # host padding / slicing, no scratch).
    footprint = 4 * (B * IN + IN * OUT + B * OUT + OUT)
    if not force_tiled and footprint <= (4 << 20):
        return pl.pallas_call(
            functools.partial(_single_block_kernel, other=other_f),
            out_shape=jax.ShapeDtypeStruct((B, OUT), jnp.float32),
        )(x, w, b2)

    return _linear_add_relu_tiled(x, w, b2, other_f, tm, tn, tk)


def linear_add_relu(x, w, b, other, *, tm=512, tn=512, tk=1024, force_tiled=False):
    """y = relu(x @ w + b + other), Linear applied to the last dim of x.

    x: (..., IN) f32; w: (IN, OUT) (transpose of PyTorch's (OUT, IN));
    b: (OUT,) or (1, OUT); other: Python scalar.
    """
    *lead, IN = x.shape
    OUT = w.shape[1]

    x2 = x.reshape(-1, IN)
    if x2.dtype != jnp.float32:
        x2 = x2.astype(jnp.float32)
    if w.dtype != jnp.float32:
        w = w.astype(jnp.float32)
    b2 = b.reshape(1, OUT).astype(jnp.float32)

    out2 = _linear_add_relu_2d(
        x2, w, b2, float(other), tm=tm, tn=tn, tk=tk, force_tiled=force_tiled
    )
    return out2.reshape(*lead, OUT)


# --------------------------------------------------------------------------
# Self-test
# --------------------------------------------------------------------------

if __name__ == "__main__":
    key = jax.random.PRNGKey(0)
    kx, kw, kb = jax.random.split(key, 3)

    # Shapes implied by the module: x1 = (1, 3, 64, 64), Linear on the last dim.
    # TODO(synk): torch.nn.Linear() in the spec has no in/out features; we pick
    # a square IN = OUT = 64 Linear acting on the last dimension.
    HIDDEN = 64
    other = 1.0

    x1 = jax.random.normal(kx, (1, 3, 64, HIDDEN), dtype=jnp.float32)
    # PyTorch Linear weight is (OUT, IN); we store the transpose (IN, OUT).
    w = jax.random.normal(kw, (HIDDEN, HIDDEN), dtype=jnp.float32) / jnp.sqrt(
        jnp.float32(HIDDEN)
    )
    b = jax.random.normal(kb, (1, HIDDEN), dtype=jnp.float32) * 0.1

    out = linear_add_relu(x1, w, b, other)              # single-block fast path
    jax.block_until_ready(out)

    ref = jnp.maximum(
        jnp.matmul(x1, w, precision=jax.lax.Precision.HIGHEST) + b + other, 0.0
    )
    assert out.shape == (1, 3, 64, HIDDEN)
    assert jnp.allclose(out, ref, atol=1e-5, rtol=1e-5)

    # Also exercise the tiled path with ragged M / K / N (no host padding of
    # M or N, edge blocks handled by Pallas; K uses a single full-dim block).
    kx2, kw2, kb2 = jax.random.split(jax.random.PRNGKey(1), 3)
    B2, IN2, OUT2 = 300, 200, 160
    xb = jax.random.normal(kx2, (B2, IN2), dtype=jnp.float32)
    wb = jax.random.normal(kw2, (IN2, OUT2), dtype=jnp.float32) / jnp.sqrt(
        jnp.float32(IN2)
    )
    bb = jax.random.normal(kb2, (1, OUT2), dtype=jnp.float32) * 0.1

    out2 = linear_add_relu(xb, wb, bb, other, force_tiled=True)
    jax.block_until_ready(out2)
    ref2 = jnp.maximum(
        jnp.matmul(xb, wb, precision=jax.lax.Precision.HIGHEST) + bb + other, 0.0
    )
    assert out2.shape == (B2, OUT2)
    assert jnp.allclose(out2, ref2, atol=1e-4, rtol=1e-4)

    print("KERNEL_OK")
</pallas_src>

<mosaic_0001>
module attributes {stable_mosaic.version = 11 : i64} {
  func.func @_single_block_kernel(%arg0: memref<192x64xf32, #tpu.memory_space<vmem>>, %arg1: memref<64x64xf32, #tpu.memory_space<vmem>>, %arg2: memref<1x64xf32, #tpu.memory_space<vmem>>, %arg3: memref<192x64xf32, #tpu.memory_space<vmem>>) attributes {dimension_semantics = [], scalar_prefetch = 0 : i64, scratch_operands = 0 : i64, tpu.core_type = #tpu.core_type<tc>} {
    %c0 = arith.constant 0 : index
    %c0_0 = arith.constant 0 : index
    %0 = vector.load %arg0[%c0, %c0_0] : memref<192x64xf32, #tpu.memory_space<vmem>>, vector<192x64xf32>
    %c0_1 = arith.constant 0 : index
    %c0_2 = arith.constant 0 : index
    %1 = vector.load %arg1[%c0_1, %c0_2] : memref<64x64xf32, #tpu.memory_space<vmem>>, vector<64x64xf32>
    %cst = arith.constant dense<0.000000e+00> : vector<192x64xf32>
    %2 = tpu.matmul %0, %1, %cst {dimension_numbers = #tpu.dot_dimension_numbers<[1], [0], [0], [1], [0, 0, 1, 1], [], []>} : vector<192x64xf32>, vector<64x64xf32>, vector<192x64xf32> -> vector<192x64xf32>
    %c0_3 = arith.constant 0 : index
    %c0_4 = arith.constant 0 : index
    %3 = vector.load %arg2[%c0_3, %c0_4] : memref<1x64xf32, #tpu.memory_space<vmem>>, vector<1x64xf32>
    %4 = vector.broadcast %3 : vector<1x64xf32> to vector<192x64xf32>
    %5 = arith.addf %2, %4 : vector<192x64xf32>
    %cst_5 = arith.constant 1.000000e+00 : f32
    %6 = vector.broadcast %cst_5 : f32 to vector<192x64xf32>
    %7 = arith.addf %5, %6 : vector<192x64xf32>
    %cst_6 = arith.constant 0.000000e+00 : f32
    %8 = vector.broadcast %cst_6 : f32 to vector<192x64xf32>
    %9 = arith.maximumf %7, %8 : vector<192x64xf32>
    %c0_7 = arith.constant 0 : index
    %c0_8 = arith.constant 0 : index
    %10 = vector.load %arg3[%c0_7, %c0_8] : memref<192x64xf32, #tpu.memory_space<vmem>>, vector<192x64xf32>
    tpu.vector_store %arg3[%c0_7, %c0_8], %9 {strides = array<i32>} : memref<192x64xf32, #tpu.memory_space<vmem>>, vector<192x64xf32>,
    return
  }
}

</mosaic_0001>

<llo_original>
// kernel: tpu_custom_call.1
$region0: #{tpu_custom_call.1}
  #allocation0 [shape = 'u32[]', space=smem, size = 0x4, offset = 0x4, fixed_abs, tag = 'smem constant byte address 0x4 - core index']
  #allocation1 [shape = 'u32[144,128]{1,0:T(1,128)}', space=vmem, size = 0x12000, scoped, tag = 'internal scratch']
  %s0 = inlined_call_operand.vmem [shape: f32[192,64], index: 0, kind: input, shape index: {}]
  %s1 = inlined_call_operand.vmem [shape: f32[64,64], index: 1, kind: input, shape index: {}]
  %s2 = inlined_call_operand.vmem [shape: f32[1,64], index: 2, kind: input, shape index: {}]
  %s3 = inlined_call_operand.vmem [shape: f32[192,64], index: 3, kind: output, shape index: {}]
  %s4 = sld [smem:[#allocation0]]
  $region22: #{tpu_custom_call.1} parent=0
    _
  %s6 = ssub.s32 1, %s4
  %s7 = scalar_select 0, %s6, %s4
  // Predicated region
  $region2: #{tpu_custom_call.1} parent=0 // pred_check
    _
  $region3: #{tpu_custom_call.1} parent=0 // pred_check_branch
    %9 = sbr.rel (0) target = $region5
  $region4: #{tpu_custom_call.1} parent=0 // pred_region
    _
  $region5: #{tpu_custom_call.1} parent=0 // pred_fallthru
    _
  // Predicated region
  $region6: #{tpu_custom_call.1} parent=0 // pred_check
    _
  $region7: #{tpu_custom_call.1} parent=0 // pred_check_branch
    %11 = sbr.rel (0) target = $region9
  $region8: #{tpu_custom_call.1} parent=0 // pred_region
    _
  $region9: #{tpu_custom_call.1} parent=0 // pred_fallthru
    _
  // Predicated region
  $region10: #{tpu_custom_call.1} parent=0 // pred_check
    _
  $region11: #{tpu_custom_call.1} parent=0 // pred_check_branch
    %13 = sbr.rel (0) target = $region13
  $region12: #{tpu_custom_call.1} parent=0 // pred_region
    _
  $region13: #{tpu_custom_call.1} parent=0 // pred_fallthru
    _
  %v14 = vld [vmem:[%s0] sm:$0xff]
  %v15 = vld [vmem:[%s0 + $0x8] sm:$0xff]
  %v16 = vld [vmem:[%s0 + $0x10] sm:$0xff]
  %v17 = vld [vmem:[%s0 + $0x18] sm:$0xff]
  %v18 = vld [vmem:[%s0 + $0x20] sm:$0xff]
  %v19 = vld [vmem:[%s0 + $0x28] sm:$0xff]
  %v20 = vld [vmem:[%s0 + $0x30] sm:$0xff]
  %v21 = vld [vmem:[%s0 + $0x38] sm:$0xff]
  %v22 = vld [vmem:[%s0 + $0x40] sm:$0xff]
  %v23 = vld [vmem:[%s0 + $0x48] sm:$0xff]
  %v24 = vld [vmem:[%s0 + $0x50] sm:$0xff]
  %v25 = vld [vmem:[%s0 + $0x58] sm:$0xff]
  %v26 = vld [vmem:[%s0 + $0x60] sm:$0xff]
  %v27 = vld [vmem:[%s0 + $0x68] sm:$0xff]
  %v28 = vld [vmem:[%s0 + $0x70] sm:$0xff]
  %v29 = vld [vmem:[%s0 + $0x78] sm:$0xff]
  %v30 = vld [vmem:[%s0 + $0x80] sm:$0xff]
  %v31 = vld [vmem:[%s0 + $0x88] sm:$0xff]
  %v32 = vld [vmem:[%s0 + $0x90] sm:$0xff]
  %v33 = vld [vmem:[%s0 + $0x98] sm:$0xff]
  %v34 = vld [vmem:[%s0 + $0xa0] sm:$0xff]
  %v35 = vld [vmem:[%s0 + $0xa8] sm:$0xff]
  %v36 = vld [vmem:[%s0 + $0xb0] sm:$0xff]
  %v37 = vld [vmem:[%s0 + $0xb8] sm:$0xff]
  %v38 = vld [vmem:[%s1] sm:$0xff]
  %v39 = vld [vmem:[%s1 + $0x8] sm:$0xff]
  %v40 = vld [vmem:[%s1 + $0x10] sm:$0xff]
  %v41 = vld [vmem:[%s1 + $0x18] sm:$0xff]
  %v42 = vld [vmem:[%s1 + $0x20] sm:$0xff]
  %v43 = vld [vmem:[%s1 + $0x28] sm:$0xff]
  %v44 = vld [vmem:[%s1 + $0x30] sm:$0xff]
  %v45 = vld [vmem:[%s1 + $0x38] sm:$0xff]
  %v46 = vld [vmem:[%s2] sm:$0x1]
  %v48 = vlaneseq
  %v49 = vshrl.u32 %v48, 7
  %v50 = vsub.s32 0, %v49
  %v51 = vrot.slane %v46, %v50
  %vm53 = vcmask 523264
  %v55 = vsel %vm53, %v14, 0
  %v58 = vsel %vm53, %v15, 0
  %v61 = vsel %vm53, %v16, 0
  %v64 = vsel %vm53, %v17, 0
  %v67 = vsel %vm53, %v18, 0
  %v70 = vsel %vm53, %v19, 0
  %v73 = vsel %vm53, %v20, 0
  %v76 = vsel %vm53, %v21, 0
  %v79 = vsel %vm53, %v22, 0
  %v82 = vsel %vm53, %v23, 0
  %v85 = vsel %vm53, %v24, 0
  %v88 = vsel %vm53, %v25, 0
  %v91 = vsel %vm53, %v26, 0
  %v94 = vsel %vm53, %v27, 0
  %v97 = vsel %vm53, %v28, 0
  %v100 = vsel %vm53, %v29, 0
  %v103 = vsel %vm53, %v30, 0
  %v106 = vsel %vm53, %v31, 0
  %v109 = vsel %vm53, %v32, 0
  %v112 = vsel %vm53, %v33, 0
  %v115 = vsel %vm53, %v34, 0
  %v118 = vsel %vm53, %v35, 0
  %v121 = vsel %vm53, %v36, 0
  %v124 = vsel %vm53, %v37, 0
  %126 = vmatprep.subr.mxu0 0.0
  %127 = vmatpush1.msra.mxu0 %v38
  %128 = vmatprep.subr.mxu0 0.0
  %129 = vmatpush1.msra.mxu0 %v39
  %130 = vmatprep.subr.mxu0 0.0
  %131 = vmatpush1.msra.mxu0 %v40
  %132 = vmatprep.subr.mxu0 0.0
  %133 = vmatpush1.msra.mxu0 %v41
  %134 = vmatprep.subr.mxu0 0.0
  %135 = vmatpush1.msra.mxu0 %v42
  %136 = vmatprep.subr.mxu0 0.0
  %137 = vmatpush1.msra.mxu0 %v43
  %138 = vmatprep.subr.mxu0 0.0
  %139 = vmatpush1.msra.mxu0 %v44
  %140 = vmatprep.subr.mxu0 0.0
  %141 = vmatpush1.msra.mxu0 %v45
  %142 = vmatprep.subr.mxu0 0.0
  %143 = vmatpush1.msra.mxu0 0.0
  %144 = vmatprep.subr.mxu0 0.0
  %145 = vmatpush1.msra.mxu0 0.0
  %146 = vmatprep.subr.mxu0 0.0
  %147 = vmatpush1.msra.mxu0 0.0
  %148 = vmatprep.subr.mxu0 0.0
  %149 = vmatpush1.msra.mxu0 0.0
  %150 = vmatprep.subr.mxu0 0.0
  %151 = vmatpush1.msra.mxu0 0.0
  %152 = vmatprep.subr.mxu0 0.0
  %153 = vmatpush1.msra.mxu0 0.0
  %154 = vmatprep.subr.mxu0 0.0
  %155 = vmatpush1.msra.mxu0 0.0
  %156 = vmatprep.subr.mxu0 0.0
  %157 = vmatpush1.msra.mxu0 0.0
  %158 = vmatprep.subr.mxu0 0.0
  %159 = vmatpush1.msra.mxu0 0.0
  %160 = vmatprep.subr.mxu0 0.0
  %161 = vmatpush1.msra.mxu0 0.0
  %162 = vmatprep.subr.mxu0 0.0
  %163 = vmatpush1.msra.mxu0 0.0
  %164 = vmatprep.subr.mxu0 0.0
  %165 = vmatpush1.msra.mxu0 0.0
  %166 = vmatprep.subr.mxu0 0.0
  %167 = vmatpush1.msra.mxu0 0.0
  %168 = vmatprep.subr.mxu0 0.0
  %169 = vmatpush1.msra.mxu0 0.0
  %170 = vmatprep.subr.mxu0 0.0
  %171 = vmatpush1.msra.mxu0 0.0
  %172 = vmatprep.subr.mxu0 0.0
  %173 = vmatpush1.msra.mxu0 0.0
  %174 = vmatprep.subr.mxu0 0.0
  %175 = vmatpush1.msra.mxu0 0.0
  %176 = vmatprep.subr.mxu0 0.0
  %177 = vmatpush1.msra.mxu0 0.0
  %178 = vmatprep.subr.mxu0 0.0
  %179 = vmatpush1.msra.mxu0 0.0
  %180 = vmatprep.subr.mxu0 0.0
  %181 = vmatpush1.msra.mxu0 0.0
  %182 = vmatprep.subr.mxu0 0.0
  %183 = vmatpush1.msra.mxu0 0.0
  %184 = vmatprep.subr.mxu0 0.0
  %185 = vmatpush1.msra.mxu0 0.0
  %186 = vmatprep.subr.mxu0 0.0
  %187 = vmatpush1.msra.mxu0 0.0
  %188 = vmatprep.subr.mxu0 0.0
  %189 = vmatpush1.msra.mxu0 0.0
  %190 = vmatprep.mubr.f32.mxu0 0.0
  %191 = vmatmul.mubr.f32.gmra.mrb[0].mxu0 %v55
  %v192 = vpop.f32.mrb[0].mxu0
  %v193 = vadd.f32 %v51, %v192
  %v194 = vpop.f32.mrb[0].mxu0
  %195 = vmatprep.mubr.f32.mxu0 0.0
  %196 = vmatmul.mubr.f32.gmra.mrb[0].mxu0 %v58
  %v197 = vpop.f32.mrb[0].mxu0
  %v198 = vadd.f32 %v51, %v197
  %v199 = vpop.f32.mrb[0].mxu0
  %200 = vmatprep.mubr.f32.mxu0 0.0
  %201 = vmatmul.mubr.f32.gmra.mrb[0].mxu0 %v61
  %v202 = vpop.f32.mrb[0].mxu0
  %v203 = vadd.f32 %v51, %v202
  %v204 = vpop.f32.mrb[0].mxu0
  %205 = vmatprep.mubr.f32.mxu0 0.0
  %206 = vmatmul.mubr.f32.gmra.mrb[0].mxu0 %v64
  %v207 = vpop.f32.mrb[0].mxu0
  %v208 = vadd.f32 %v51, %v207
  %v209 = vpop.f32.mrb[0].mxu0
  %210 = vmatprep.mubr.f32.mxu0 0.0
  %211 = vmatmul.mubr.f32.gmra.mrb[0].mxu0 %v67
  %v212 = vpop.f32.mrb[0].mxu0
  %v213 = vadd.f32 %v51, %v212
  %v214 = vpop.f32.mrb[0].mxu0
  %215 = vmatprep.mubr.f32.mxu0 0.0
  %216 = vmatmul.mubr.f32.gmra.mrb[0].mxu0 %v70
  %v217 = vpop.f32.mrb[0].mxu0
  %v218 = vadd.f32 %v51, %v217
  %v219 = vpop.f32.mrb[0].mxu0
  %220 = vmatprep.mubr.f32.mxu0 0.0
  %221 = vmatmul.mubr.f32.gmra.mrb[0].mxu0 %v73
  %v222 = vpop.f32.mrb[0].mxu0
  %v223 = vadd.f32 %v51, %v222
  %v224 = vpop.f32.mrb[0].mxu0
  %225 = vmatprep.mubr.f32.mxu0 0.0
  %226 = vmatmul.mubr.f32.gmra.mrb[0].mxu0 %v76
  %v227 = vpop.f32.mrb[0].mxu0
  %v228 = vadd.f32 %v51, %v227
  %v229 = vpop.f32.mrb[0].mxu0
  %230 = vmatprep.mubr.f32.mxu0 0.0
  %231 = vmatmul.mubr.f32.gmra.mrb[0].mxu0 %v79
  %v232 = vpop.f32.mrb[0].mxu0
  %v233 = vadd.f32 %v51, %v232
  %v234 = vpop.f32.mrb[0].mxu0
  %235 = vmatprep.mubr.f32.mxu0 0.0
  %236 = vmatmul.mubr.f32.gmra.mrb[0].mxu0 %v82
  %v237 = vpop.f32.mrb[0].mxu0
  %v238 = vadd.f32 %v51, %v237
  %v239 = vpop.f32.mrb[0].mxu0
  %240 = vmatprep.mubr.f32.mxu0 0.0
  %241 = vmatmul.mubr.f32.gmra.mrb[0].mxu0 %v85
  %v242 = vpop.f32.mrb[0].mxu0
  %v243 = vadd.f32 %v51, %v242
  %v244 = vpop.f32.mrb[0].mxu0
  %245 = vmatprep.mubr.f32.mxu0 0.0
  %246 = vmatmul.mubr.f32.gmra.mrb[0].mxu0 %v88
  %v247 = vpop.f32.mrb[0].mxu0
  %v248 = vadd.f32 %v51, %v247
  %v249 = vpop.f32.mrb[0].mxu0
  %250 = vmatprep.mubr.f32.mxu0 0.0
  %251 = vmatmul.mubr.f32.gmra.mrb[0].mxu0 %v91
  %v252 = vpop.f32.mrb[0].mxu0
  %v253 = vadd.f32 %v51, %v252
  %v254 = vpop.f32.mrb[0].mxu0
  %255 = vmatprep.mubr.f32.mxu0 0.0
  %256 = vmatmul.mubr.f32.gmra.mrb[0].mxu0 %v94
  %v257 = vpop.f32.mrb[0].mxu0
  %v258 = vadd.f32 %v51, %v257
  %v259 = vpop.f32.mrb[0].mxu0
  %260 = vmatprep.mubr.f32.mxu0 0.0
  %261 = vmatmul.mubr.f32.gmra.mrb[0].mxu0 %v97
  %v262 = vpop.f32.mrb[0].mxu0
  %v263 = vadd.f32 %v51, %v262
  %v264 = vpop.f32.mrb[0].mxu0
  %265 = vmatprep.mubr.f32.mxu0 0.0
  %266 = vmatmul.mubr.f32.gmra.mrb[0].mxu0 %v100
  %v267 = vpop.f32.mrb[0].mxu0
  %v268 = vadd.f32 %v51, %v267
  %v269 = vpop.f32.mrb[0].mxu0
  %270 = vmatprep.mubr.f32.mxu0 0.0
  %271 = vmatmul.mubr.f32.gmra.mrb[0].mxu0 %v103
  %v272 = vpop.f32.mrb[0].mxu0
  %v273 = vadd.f32 %v51, %v272
  %v274 = vpop.f32.mrb[0].mxu0
  %275 = vmatprep.mubr.f32.mxu0 0.0
  %276 = vmatmul.mubr.f32.gmra.mrb[0].mxu0 %v106
  %v277 = vpop.f32.mrb[0].mxu0
  %v278 = vadd.f32 %v51, %v277
  %v279 = vpop.f32.mrb[0].mxu0
  %280 = vmatprep.mubr.f32.mxu0 0.0
  %281 = vmatmul.mubr.f32.gmra.mrb[0].mxu0 %v109
  %v282 = vpop.f32.mrb[0].mxu0
  %v283 = vadd.f32 %v51, %v282
  %v284 = vpop.f32.mrb[0].mxu0
  %285 = vmatprep.mubr.f32.mxu0 0.0
  %286 = vmatmul.mubr.f32.gmra.mrb[0].mxu0 %v112
  %v287 = vpop.f32.mrb[0].mxu0
  %v288 = vadd.f32 %v51, %v287
  %v289 = vpop.f32.mrb[0].mxu0
  %290 = vmatprep.mubr.f32.mxu0 0.0
  %291 = vmatmul.mubr.f32.gmra.mrb[0].mxu0 %v115
  %v292 = vpop.f32.mrb[0].mxu0
  %v293 = vadd.f32 %v51, %v292
  %v294 = vpop.f32.mrb[0].mxu0
  %295 = vmatprep.mubr.f32.mxu0 0.0
  %296 = vmatmul.mubr.f32.gmra.mrb[0].mxu0 %v118
  %v297 = vpop.f32.mrb[0].mxu0
  %v298 = vadd.f32 %v51, %v297
  %v299 = vpop.f32.mrb[0].mxu0
  %300 = vmatprep.mubr.f32.mxu0 0.0
  %301 = vmatmul.mubr.f32.gmra.mrb[0].mxu0 %v121
  %v302 = vpop.f32.mrb[0].mxu0
  %v303 = vadd.f32 %v51, %v302
  %v304 = vpop.f32.mrb[0].mxu0
  %305 = vmatprep.mubr.f32.mxu0 0.0
  %306 = vmatmul.mubr.f32.gmra.mrb[0].mxu0 %v124
  %v307 = vpop.f32.mrb[0].mxu0
  %v308 = vadd.f32 %v51, %v307
  %v309 = vpop.f32.mrb[0].mxu0
  %310 = vdwg.mxu0
  %v311 = vadd.f32 %v193, 1.0
  %v312 = vadd.f32 %v198, 1.0
  %v313 = vadd.f32 %v203, 1.0
  %v314 = vadd.f32 %v208, 1.0
  %v315 = vadd.f32 %v213, 1.0
  %v316 = vadd.f32 %v218, 1.0
  %v317 = vadd.f32 %v223, 1.0
  %v318 = vadd.f32 %v228, 1.0
  %v319 = vadd.f32 %v233, 1.0
  %v320 = vadd.f32 %v238, 1.0
  %v321 = vadd.f32 %v243, 1.0
  %v322 = vadd.f32 %v248, 1.0
  %v323 = vadd.f32 %v253, 1.0
  %v324 = vadd.f32 %v258, 1.0
  %v325 = vadd.f32 %v263, 1.0
  %v326 = vadd.f32 %v268, 1.0
  %v327 = vadd.f32 %v273, 1.0
  %v328 = vadd.f32 %v278, 1.0
  %v329 = vadd.f32 %v283, 1.0
  %v330 = vadd.f32 %v288, 1.0
  %v331 = vadd.f32 %v293, 1.0
  %v332 = vadd.f32 %v298, 1.0
  %v333 = vadd.f32 %v303, 1.0
  %v334 = vadd.f32 %v308, 1.0
  %v335 = vmax.f32 %v311, 0.0
  %v336 = vmax.f32 %v312, 0.0
  %v337 = vmax.f32 %v313, 0.0
  %v338 = vmax.f32 %v314, 0.0
  %v339 = vmax.f32 %v315, 0.0
  %v340 = vmax.f32 %v316, 0.0
  %v341 = vmax.f32 %v317, 0.0
  %v342 = vmax.f32 %v318, 0.0
  %v343 = vmax.f32 %v319, 0.0
  %v344 = vmax.f32 %v320, 0.0
  %v345 = vmax.f32 %v321, 0.0
  %v346 = vmax.f32 %v322, 0.0
  %v347 = vmax.f32 %v323, 0.0
  %v348 = vmax.f32 %v324, 0.0
  %v349 = vmax.f32 %v325, 0.0
  %v350 = vmax.f32 %v326, 0.0
  %v351 = vmax.f32 %v327, 0.0
  %v352 = vmax.f32 %v328, 0.0
  %v353 = vmax.f32 %v329, 0.0
  %v354 = vmax.f32 %v330, 0.0
  %v355 = vmax.f32 %v331, 0.0
  %v356 = vmax.f32 %v332, 0.0
  %v357 = vmax.f32 %v333, 0.0
  %v358 = vmax.f32 %v334, 0.0
  %359 = vst.msk [vmem:[%s3] sm:$0xff] %vm53, %v335
  %360 = vst.msk [vmem:[%s3 + $0x8] sm:$0xff] %vm53, %v336
  %361 = vst.msk [vmem:[%s3 + $0x10] sm:$0xff] %vm53, %v337
  %362 = vst.msk [vmem:[%s3 + $0x18] sm:$0xff] %vm53, %v338
  %363 = vst.msk [vmem:[%s3 + $0x20] sm:$0xff] %vm53, %v339
  %364 = vst.msk [vmem:[%s3 + $0x28] sm:$0xff] %vm53, %v340
  %365 = vst.msk [vmem:[%s3 + $0x30] sm:$0xff] %vm53, %v341
  %366 = vst.msk [vmem:[%s3 + $0x38] sm:$0xff] %vm53, %v342
  %367 = vst.msk [vmem:[%s3 + $0x40] sm:$0xff] %vm53, %v343
  %368 = vst.msk [vmem:[%s3 + $0x48] sm:$0xff] %vm53, %v344
  %369 = vst.msk [vmem:[%s3 + $0x50] sm:$0xff] %vm53, %v345
  %370 = vst.msk [vmem:[%s3 + $0x58] sm:$0xff] %vm53, %v346
  %371 = vst.msk [vmem:[%s3 + $0x60] sm:$0xff] %vm53, %v347
  %372 = vst.msk [vmem:[%s3 + $0x68] sm:$0xff] %vm53, %v348
  %373 = vst.msk [vmem:[%s3 + $0x70] sm:$0xff] %vm53, %v349
  %374 = vst.msk [vmem:[%s3 + $0x78] sm:$0xff] %vm53, %v350
  %375 = vst.msk [vmem:[%s3 + $0x80] sm:$0xff] %vm53, %v351
  %376 = vst.msk [vmem:[%s3 + $0x88] sm:$0xff] %vm53, %v352
  %377 = vst.msk [vmem:[%s3 + $0x90] sm:$0xff] %vm53, %v353
  %378 = vst.msk [vmem:[%s3 + $0x98] sm:$0xff] %vm53, %v354
  %379 = vst.msk [vmem:[%s3 + $0xa0] sm:$0xff] %vm53, %v355
  %380 = vst.msk [vmem:[%s3 + $0xa8] sm:$0xff] %vm53, %v356
  %381 = vst.msk [vmem:[%s3 + $0xb0] sm:$0xff] %vm53, %v357
  %382 = vst.msk [vmem:[%s3 + $0xb8] sm:$0xff] %vm53, %v358
  // Predicated region
  $region14: #{tpu_custom_call.1} parent=0 // pred_check
    _
  $region15: #{tpu_custom_call.1} parent=0 // pred_check_branch
    %384 = sbr.rel (0) target = $region17
  $region16: #{tpu_custom_call.1} parent=0 // pred_region
    _
  $region17: #{tpu_custom_call.1} parent=0 // pred_fallthru
    _
  // Predicated region
  $region18: #{tpu_custom_call.1} parent=0 // pred_check
    _
  $region19: #{tpu_custom_call.1} parent=0 // pred_check_branch
    %386 = sbr.rel (0) target = $region21
  $region20: #{tpu_custom_call.1} parent=0 // pred_region
    _
  $region21: #{tpu_custom_call.1} parent=0 // pred_fallthru
    _

</llo_original>
